<compile_context>
chip_gen: v6e
topology: v6e:2x2x1
jax: 0.10.0
libtpu: 0.0.40
codegen_flags: <defaults>
</compile_context>

<pallas_src>
import functools

import jax
import jax.numpy as jnp
from jax.experimental import pallas as pl
from jax.experimental.pallas import tpu as pltpu

LANE = 128
SUBLANE = 8


def _round_up(x, m):
    return (x + m - 1) // m * m


def _pad2(x, rows, cols):
    """Zero-pad a 2-D array up to (rows, cols)."""
    out = jnp.zeros((rows, cols), x.dtype)
    return out.at[: x.shape[0], : x.shape[1]].set(x)


# ----------------------------- Pallas kernel --------------------------------
def gcn_fused_kernel(a_ref, x_ref, w_ref, b_ref, o_ref, xw_ref, *, n_layers, tm):
    """Fused multi-layer GCN.  Grid axes: (graph, layer, row_tile).

    a_ref  : (1, tm, N_pad)     bf16  normalized-adjacency row tile (streamed)
    x_ref  : (1, N_pad, F_pad)  f32   padded input features (used by layer 0)
    w_ref  : (1, F_pad, F_pad)  f32   padded weight of the current layer
    b_ref  : (1, 1, F_pad)      f32   padded bias of the current layer
    o_ref  : (1, N_pad, F_pad)  f32   resident activation buffer / final output
    xw_ref : (N_pad, F_pad)     bf16  hoisted H_prev @ W_l (per graph & layer)
    """
    l = pl.program_id(1)
    t = pl.program_id(2)

    # Hoist the feature transform: compute XW once per (graph, layer) at the first
    # row tile, instead of re-deriving it for every A row tile.
    @pl.when(t == 0)
    def _():
        @pl.when(l == 0)
        def _():
            xw_ref[...] = jnp.dot(
                x_ref[0].astype(jnp.bfloat16),
                w_ref[0].astype(jnp.bfloat16),
                preferred_element_type=jnp.float32,
            ).astype(xw_ref.dtype)

        @pl.when(l > 0)
        def _():
            # Previous layer's activation is fully resident in the output block.
            xw_ref[...] = jnp.dot(
                o_ref[0].astype(jnp.bfloat16),
                w_ref[0].astype(jnp.bfloat16),
                preferred_element_type=jnp.float32,
            ).astype(xw_ref.dtype)

    # Neighborhood aggregation on the MXU: bf16 x bf16 -> f32 accumulate, + bias.
    agg = jnp.dot(a_ref[0], xw_ref[...], preferred_element_type=jnp.float32)
    agg = agg + b_ref[0]

    # ReLU on all but the last layer (matches GCN.forward).
    out_rows = jnp.where(l == n_layers - 1, agg, jnp.maximum(agg, 0.0))

    row0 = pl.multiple_of(t * tm, tm)
    o_ref[0, pl.ds(row0, tm), :] = out_rows


def gcn_model_forward(a_hat, x, weights, biases, *, row_tile=256):
    """Run the whole GCN backbone on a batch of graphs in one pallas_call.

    a_hat   : [G, N_pad, N_pad]  bf16
    x       : [G, N_pad, F_pad]  f32
    weights : [L, F_pad, F_pad]  f32
    biases  : [L, 1, F_pad]      f32
    returns : [G, N_pad, F_pad]  f32
    """
    g, n_pad, _ = a_hat.shape
    n_layers, f_pad, _ = weights.shape

    tm = n_pad if n_pad <= row_tile else row_tile
    assert n_pad % tm == 0, "N_pad must be a multiple of the row tile"
    n_tiles = n_pad // tm

    kernel = functools.partial(gcn_fused_kernel, n_layers=n_layers, tm=tm)

    return pl.pallas_call(
        kernel,
        out_shape=jax.ShapeDtypeStruct((g, n_pad, f_pad), jnp.float32),
        grid_spec=pltpu.PrefetchScalarGridSpec(
            num_scalar_prefetch=0,
            grid=(g, n_layers, n_tiles),
            in_specs=[
                # A row tile is the only thing streamed; activations stay resident.
                pl.BlockSpec((1, tm, n_pad), lambda gi, li, ti: (gi, ti, 0)),
                pl.BlockSpec((1, n_pad, f_pad), lambda gi, li, ti: (gi, 0, 0)),
                pl.BlockSpec((1, f_pad, f_pad), lambda gi, li, ti: (li, 0, 0)),
                pl.BlockSpec((1, 1, f_pad), lambda gi, li, ti: (li, 0, 0)),
            ],
            # Output block index depends only on the graph -> written back to HBM once
            # per graph; it doubles as the hidden-activation buffer between layers.
            out_specs=pl.BlockSpec((1, n_pad, f_pad), lambda gi, li, ti: (gi, 0, 0)),
            scratch_shapes=[pltpu.VMEM((n_pad, f_pad), jnp.bfloat16)],
        ),
        compiler_params=pltpu.CompilerParams(
            # graph axis parallel (uses both v7x TensorCores); layer/row-tile axes
            # carry state through scratch / output block -> arbitrary.
            dimension_semantics=("parallel", "arbitrary", "arbitrary"),
            vmem_limit_bytes=48 * 1024 * 1024,  # <= v7x 64 MiB physical VMEM
        ),
    )(a_hat, x, weights, biases)


# ------------------------------ JAX glue -------------------------------------
def normalized_adjacency(edge_index, num_nodes):
    """Dense GCN normalization: D^{-1/2} (A + I) D^{-1/2}.

    Edges are symmetrized (undirected usage).  Self loops are added only where
    missing (diag set to 1), matching PyG add_remaining_self_loops semantics.
    """
    src, dst = edge_index[0], edge_index[1]
    a = jnp.zeros((num_nodes, num_nodes), jnp.float32)
    a = a.at[src, dst].set(1.0)
    a = a.at[dst, src].set(1.0)
    a = jnp.maximum(a, jnp.eye(num_nodes, dtype=jnp.float32))
    deg = a.sum(axis=1)
    d_inv_sqrt = jnp.where(deg > 0, 1.0 / jnp.sqrt(deg), 0.0)
    return a * d_inv_sqrt[:, None] * d_inv_sqrt[None, :]


def init_gcn_params(key, in_dim, hid_dim, out_dim, n_layers):
    """Deterministic init; weights stored (in, out) and zero-padded to (F_pad, F_pad)."""
    dims = [in_dim] + [hid_dim] * (n_layers - 1) + [out_dim]
    f_pad = _round_up(max(dims), LANE)
    ws, bs = [], []
    for li in range(n_layers):
        key, kw = jax.random.split(key)
        fan_in, fan_out = dims[li], dims[li + 1]
        scale = 1.0 / jnp.sqrt(jnp.float32(fan_in))
        w = jax.random.uniform(kw, (fan_in, fan_out), jnp.float32, -scale, scale)
        b = jnp.zeros((1, fan_out), jnp.float32)
        ws.append(_pad2(w, f_pad, f_pad))
        bs.append(_pad2(b, 1, f_pad))
    return jnp.stack(ws), jnp.stack(bs)


def model_forward(params, x1, edge_index1, x2, edge_index2, *, out_dim):
    """Model.forward(data1, data2) -> (h1, h2) with the GCN backbone."""
    weights, biases = params
    f_pad = weights.shape[-1]
    n1, n2 = x1.shape[0], x2.shape[0]
    n_pad = _round_up(max(n1, n2), SUBLANE)

    a1 = normalized_adjacency(edge_index1, n1)
    a2 = normalized_adjacency(edge_index2, n2)
    a = jnp.stack([_pad2(a1, n_pad, n_pad),
                   _pad2(a2, n_pad, n_pad)]).astype(jnp.bfloat16)
    x = jnp.stack([_pad2(x1, n_pad, f_pad),
                   _pad2(x2, n_pad, f_pad)])

    out = gcn_model_forward(a, x, weights, biases)
    h1 = out[0, :n1, :out_dim]
    h2 = out[1, :n2, :out_dim]
    return h1, h2


# ------------------------------- driver --------------------------------------
if __name__ == "__main__":
    # small shapes consistent with the module
    N = 8          # nodes per graph
    IN_DIM = 16
    HID_DIM = 32
    OUT_DIM = 8
    N_LAYERS = 2
    # TODO(synk): projection / semi_loss / loss / DBN paths are not part of
    # Model.forward(); not implemented.

    key = jax.random.PRNGKey(0)
    k_par, k_x1, k_x2 = jax.random.split(key, 3)

    params = init_gcn_params(k_par, IN_DIM, HID_DIM, OUT_DIM, N_LAYERS)

    x1 = jax.random.normal(k_x1, (N, IN_DIM), jnp.float32)
    x2 = jax.random.normal(k_x2, (N, IN_DIM), jnp.float32)

    # deterministic ring graphs (undirected after symmetrization)
    idx = jnp.arange(N, dtype=jnp.int32)
    edge_index1 = jnp.stack([idx, (idx + 1) % N])   # ring
    edge_index2 = jnp.stack([idx, (idx + 2) % N])   # skip-ring

    h1, h2 = model_forward(params, x1, edge_index1, x2, edge_index2, out_dim=OUT_DIM)
    jax.block_until_ready((h1, h2))

    assert h1.shape == (N, OUT_DIM) and h2.shape == (N, OUT_DIM)
    assert bool(jnp.all(jnp.isfinite(h1))) and bool(jnp.all(jnp.isfinite(h2)))
    print("KERNEL_OK")
</pallas_src>

<mosaic_0001>
module attributes {stable_mosaic.version = 11 : i64} {
  func.func @gcn_fused_kernel(%arg0: i32, %arg1: i32, %arg2: i32, %arg3: memref<1x8x8xbf16, #tpu.memory_space<vmem>>, %arg4: memref<1x8x128xf32, #tpu.memory_space<vmem>>, %arg5: memref<1x128x128xf32, #tpu.memory_space<vmem>>, %arg6: memref<1x1x128xf32, #tpu.memory_space<vmem>>, %arg7: memref<1x8x128xf32, #tpu.memory_space<vmem>>, %arg8: memref<8x128xbf16, #tpu.memory_space<vmem>>) attributes {dimension_semantics = [#tpu.dimension_semantics<parallel>, #tpu.dimension_semantics<arbitrary>, #tpu.dimension_semantics<arbitrary>], iteration_bounds = array<i64: 2, 2, 1>, scalar_prefetch = 0 : i64, scratch_operands = 1 : i64, tpu.core_type = #tpu.core_type<tc>, window_params = [{transform_indices = @transform_0, window_bounds = array<i64: 1, 8, 8>}, {transform_indices = @transform_1, window_bounds = array<i64: 1, 8, 128>}, {transform_indices = @transform_2, window_bounds = array<i64: 1, 128, 128>}, {transform_indices = @transform_3, window_bounds = array<i64: 1, 1, 128>}, {transform_indices = @transform_4, window_bounds = array<i64: 1, 8, 128>}]} {
    %c0_i32 = arith.constant 0 : i32
    %0 = arith.cmpi eq, %arg2, %c0_i32 : i32
    %1 = arith.extui %0 : i1 to i32
    %c0_i32_0 = arith.constant 0 : i32
    %2 = arith.cmpi ne, %1, %c0_i32_0 : i32
    scf.if %2 {
      %c0_i32_11 = arith.constant 0 : i32
      %21 = arith.cmpi eq, %arg1, %c0_i32_11 : i32
      %22 = arith.extui %21 : i1 to i32
      %c0_i32_12 = arith.constant 0 : i32
      %23 = arith.cmpi ne, %22, %c0_i32_12 : i32
      scf.if %23 {
        %c0_15 = arith.constant 0 : index
        %c0_16 = arith.constant 0 : index
        %c0_17 = arith.constant 0 : index
        %27 = vector.load %arg4[%c0_15, %c0_16, %c0_17] : memref<1x8x128xf32, #tpu.memory_space<vmem>>, vector<1x8x128xf32>
        %28 = vector.shape_cast %27 : vector<1x8x128xf32> to vector<8x128xf32>
        %29 = arith.truncf %28 : vector<8x128xf32> to vector<8x128xbf16>
        %c0_18 = arith.constant 0 : index
        %c0_19 = arith.constant 0 : index
        %c0_20 = arith.constant 0 : index
        %30 = vector.load %arg5[%c0_18, %c0_19, %c0_20] : memref<1x128x128xf32, #tpu.memory_space<vmem>>, vector<1x128x128xf32>
        %31 = vector.shape_cast %30 : vector<1x128x128xf32> to vector<128x128xf32>
        %32 = arith.truncf %31 : vector<128x128xf32> to vector<128x128xbf16>
        %cst_21 = arith.constant dense<0.000000e+00> : vector<8x128xf32>
        %33 = tpu.matmul %29, %32, %cst_21 {dimension_numbers = #tpu.dot_dimension_numbers<[1], [0], [0], [1], [0, 0, 1, 1], [], []>} : vector<8x128xbf16>, vector<128x128xbf16>, vector<8x128xf32> -> vector<8x128xf32>
        %34 = arith.truncf %33 : vector<8x128xf32> to vector<8x128xbf16>
        %c0_22 = arith.constant 0 : index
        %c0_23 = arith.constant 0 : index
        %35 = vector.load %arg8[%c0_22, %c0_23] : memref<8x128xbf16, #tpu.memory_space<vmem>>, vector<8x128xbf16>
        tpu.vector_store %arg8[%c0_22, %c0_23], %34 {strides = array<i32>} : memref<8x128xbf16, #tpu.memory_space<vmem>>, vector<8x128xbf16>,
      } else {
      }
      %c0_i32_13 = arith.constant 0 : i32
      %24 = arith.cmpi sgt, %arg1, %c0_i32_13 : i32
      %25 = arith.extui %24 : i1 to i32
      %c0_i32_14 = arith.constant 0 : i32
      %26 = arith.cmpi ne, %25, %c0_i32_14 : i32
      scf.if %26 {
        %c0_15 = arith.constant 0 : index
        %c0_16 = arith.constant 0 : index
        %c0_17 = arith.constant 0 : index
        %27 = vector.load %arg7[%c0_15, %c0_16, %c0_17] : memref<1x8x128xf32, #tpu.memory_space<vmem>>, vector<1x8x128xf32>
        %28 = vector.shape_cast %27 : vector<1x8x128xf32> to vector<8x128xf32>
        %29 = arith.truncf %28 : vector<8x128xf32> to vector<8x128xbf16>
        %c0_18 = arith.constant 0 : index
        %c0_19 = arith.constant 0 : index
        %c0_20 = arith.constant 0 : index
        %30 = vector.load %arg5[%c0_18, %c0_19, %c0_20] : memref<1x128x128xf32, #tpu.memory_space<vmem>>, vector<1x128x128xf32>
        %31 = vector.shape_cast %30 : vector<1x128x128xf32> to vector<128x128xf32>
        %32 = arith.truncf %31 : vector<128x128xf32> to vector<128x128xbf16>
        %cst_21 = arith.constant dense<0.000000e+00> : vector<8x128xf32>
        %33 = tpu.matmul %29, %32, %cst_21 {dimension_numbers = #tpu.dot_dimension_numbers<[1], [0], [0], [1], [0, 0, 1, 1], [], []>} : vector<8x128xbf16>, vector<128x128xbf16>, vector<8x128xf32> -> vector<8x128xf32>
        %34 = arith.truncf %33 : vector<8x128xf32> to vector<8x128xbf16>
        %c0_22 = arith.constant 0 : index
        %c0_23 = arith.constant 0 : index
        %35 = vector.load %arg8[%c0_22, %c0_23] : memref<8x128xbf16, #tpu.memory_space<vmem>>, vector<8x128xbf16>
        tpu.vector_store %arg8[%c0_22, %c0_23], %34 {strides = array<i32>} : memref<8x128xbf16, #tpu.memory_space<vmem>>, vector<8x128xbf16>,
      } else {
      }
    } else {
    }
    %c0 = arith.constant 0 : index
    %c0_1 = arith.constant 0 : index
    %c0_2 = arith.constant 0 : index
    %3 = vector.load %arg3[%c0, %c0_1, %c0_2] : memref<1x8x8xbf16, #tpu.memory_space<vmem>>, vector<1x8x8xbf16>
    %4 = vector.shape_cast %3 : vector<1x8x8xbf16> to vector<8x8xbf16>
    %c0_3 = arith.constant 0 : index
    %c0_4 = arith.constant 0 : index
    %5 = vector.load %arg8[%c0_3, %c0_4] : memref<8x128xbf16, #tpu.memory_space<vmem>>, vector<8x128xbf16>
    %cst = arith.constant dense<0.000000e+00> : vector<8x128xf32>
    %6 = tpu.matmul %4, %5, %cst {dimension_numbers = #tpu.dot_dimension_numbers<[1], [0], [0], [1], [0, 0, 1, 1], [], []>} : vector<8x8xbf16>, vector<8x128xbf16>, vector<8x128xf32> -> vector<8x128xf32>
    %c0_5 = arith.constant 0 : index
    %c0_6 = arith.constant 0 : index
    %c0_7 = arith.constant 0 : index
    %7 = vector.load %arg6[%c0_5, %c0_6, %c0_7] : memref<1x1x128xf32, #tpu.memory_space<vmem>>, vector<1x1x128xf32>
    %8 = vector.shape_cast %7 : vector<1x1x128xf32> to vector<1x128xf32>
    %9 = vector.broadcast %8 : vector<1x128xf32> to vector<8x128xf32>
    %10 = arith.addf %6, %9 : vector<8x128xf32>
    %c1_i32 = arith.constant 1 : i32
    %11 = arith.cmpi eq, %arg1, %c1_i32 : i32
    %cst_8 = arith.constant 0.000000e+00 : f32
    %12 = vector.broadcast %cst_8 : f32 to vector<8x128xf32>
    %13 = arith.maximumf %10, %12 : vector<8x128xf32>
    %14 = arith.select %11, %10, %13 : vector<8x128xf32>
    %c8_i32 = arith.constant 8 : i32
    %15 = arith.muli %arg2, %c8_i32 : i32
    %16 = tpu.assume_multiple %15, 8 : i32
    %c0_9 = arith.constant 0 : index
    %17 = arith.index_cast %16 : i32 to index
    %c0_10 = arith.constant 0 : index
    %18 = vector.load %arg7[%c0_9, %17, %c0_10] : memref<1x8x128xf32, #tpu.memory_space<vmem>>, vector<1x8x128xf32>
    %19 = vector.shape_cast %18 : vector<1x8x128xf32> to vector<8x128xf32>
    %20 = vector.shape_cast %14 : vector<8x128xf32> to vector<1x8x128xf32>
    tpu.vector_store %arg7[%c0_9, %17, %c0_10], %20 {strides = array<i32>} : memref<1x8x128xf32, #tpu.memory_space<vmem>>, vector<1x8x128xf32>,
    return
  }
  func.func @transform_0(%arg0: i32, %arg1: i32, %arg2: i32) -> (i32, i32, i32) {
    %c0_i32 = arith.constant 0 : i32
    %c0_i32_0 = arith.constant 0 : i32
    return %arg0, %arg2, %c0_i32 : i32, i32, i32
  }
  func.func @transform_1(%arg0: i32, %arg1: i32, %arg2: i32) -> (i32, i32, i32) {
    %c0_i32 = arith.constant 0 : i32
    %c0_i32_0 = arith.constant 0 : i32
    %c0_i32_1 = arith.constant 0 : i32
    return %arg0, %c0_i32, %c0_i32_0 : i32, i32, i32
  }
  func.func @transform_2(%arg0: i32, %arg1: i32, %arg2: i32) -> (i32, i32, i32) {
    %c0_i32 = arith.constant 0 : i32
    %c0_i32_0 = arith.constant 0 : i32
    %c0_i32_1 = arith.constant 0 : i32
    return %arg1, %c0_i32, %c0_i32_0 : i32, i32, i32
  }
  func.func @transform_3(%arg0: i32, %arg1: i32, %arg2: i32) -> (i32, i32, i32) {
    %c0_i32 = arith.constant 0 : i32
    %c0_i32_0 = arith.constant 0 : i32
    %c0_i32_1 = arith.constant 0 : i32
    return %arg1, %c0_i32, %c0_i32_0 : i32, i32, i32
  }
  func.func @transform_4(%arg0: i32, %arg1: i32, %arg2: i32) -> (i32, i32, i32) {
    %c0_i32 = arith.constant 0 : i32
    %c0_i32_0 = arith.constant 0 : i32
    %c0_i32_1 = arith.constant 0 : i32
    return %arg0, %c0_i32, %c0_i32_0 : i32, i32, i32
  }
}

</mosaic_0001>

<llo_original>
// kernel: tpu_custom_call.1
$region0: #{tpu_custom_call.1}
  #allocation0 [shape = 'u32[]', space=smem, size = 0x4, offset = 0x4, fixed_abs, tag = 'smem constant byte address 0x4 - core index']
  #allocation1 [shape = 'u32[144,128]{1,0:T(1,128)}', space=vmem, size = 0x12000, scoped, tag = 'internal scratch']
  #allocation2 [shape = 'bf16[8,128]{1,0:T(8,128)(2,1)}', space=vmem, size = 0x800, scoped, tag = 'scratch operand']
  %s0 = inlined_call_operand.hbm [shape: bf16[2,8,8], index: 0, kind: input, shape index: {}]
  %s1 = inlined_call_operand.hbm [shape: f32[2,8,128], index: 1, kind: input, shape index: {}]
  %s2 = inlined_call_operand.hbm [shape: f32[2,128,128], index: 2, kind: input, shape index: {}]
  %s3 = inlined_call_operand.vmem [shape: f32[2,1,128], index: 3, kind: input, shape index: {}]
  %s4 = inlined_call_operand.hbm [shape: f32[2,8,128], index: 4, kind: output, shape index: {}]
  %s5 = sld [smem:[#allocation0]]
  $region73: #{tpu_custom_call.1} parent=0
    _
  %s7 = ssub.s32 1, %s5
  %s8 = scalar_select 0, %s7, %s5
  $region1: #{tpu_custom_call.1} parent=0
    #allocation3 [shape = 'u8[4096]{0}', space=vmem, size = 0x1000, scoped, tag = 'input window, operand 0']
    #allocation4 [shape = 's32[2]{0}', space=sflag, size = 0x8, scoped, tag = 'scoped memory for tpu_custom_call.1']
    #allocation5 [shape = 's32[2]{0}', space=sflag, size = 0x8, scoped, tag = 'scoped memory for tpu_custom_call.1']
    #allocation6 [shape = 'u8[8192]{0}', space=vmem, size = 0x2000, scoped, tag = 'input window, operand 1']
    #allocation7 [shape = 's32[2]{0}', space=sflag, size = 0x8, scoped, tag = 'scoped memory for tpu_custom_call.1']
    #allocation8 [shape = 'u8[131072]{0}', space=vmem, size = 0x20000, scoped, tag = 'input window, operand 2']
    #allocation9 [shape = 'u8[8192]{0}', space=vmem, size = 0x2000, scoped, tag = 'output window, operand 0']
    %9 = vsyncpa [#allocation4], 0
    %s10 = scalar_lea.sflag [#allocation4], 1
    %11 = vsyncpa %s10, 0
    %12 = vsyncpa [#allocation7], 0
    %s13 = scalar_lea.sflag [#allocation7], 1
    %14 = vsyncpa %s13, 0
    %15 = vsyncpa [#allocation5], 0
    %s16 = scalar_lea.sflag [#allocation5], 1
    %17 = vsyncpa %s16, 0
    loop: start=0, step=1, limit=6
    $region2: #{tpu_custom_call.1} parent=1 // loop_pre_header
      _
    $region3: #{tpu_custom_call.1} parent=1 // loop_header
      %s19 = sphi 0, %s23
      %p20 = scmp.ge.s32.totalorder %s19, 6
      %s26 = sphi 0, %s45
      %s27 = sphi 0, %s41
      %s28 = sphi 0, %s37
      %s29 = sphi 0, %s26
      %s30 = sphi 0, %s27
      %s31 = sphi 0, %s28
      %s32 = sphi 0, %s29
      %s33 = sphi 0, %s30
      %s34 = sphi 0, %s31
      %s50 = sphi 0, %s52
      %s53 = sphi 0, %s50
      %s54 = sphi 0, %s53
      %s70 = sphi 0, %s54
      %s76 = sphi 0, %s78
      %s79 = sphi 0, %s76
      %s80 = sphi 0, %s79
      %s96 = sphi 0, %s80
      %s102 = sphi 0, %s104
      %s105 = sphi 0, %s102
      %s106 = sphi 0, %s105
      %s122 = sphi 0, %s106
      %s128 = sphi 0, %s130
      %s131 = sphi 0, %s128
      %s132 = sphi 0, %s131
      %s148 = sphi 0, %s132
      %s154 = sphi 0, %s156
      %s157 = sphi 0, %s154
      %s158 = sphi 0, %s157
      %s174 = sphi 0, %s158
    $region4: #{tpu_custom_call.1} parent=1 // loop_header_branch
      %22 = sbr.rel (%p20) target = $region8
    $region5: #{tpu_custom_call.1} parent=1 // loop_body
      %s24 = ssub.s32 %s19, 1
      %s25 = ssub.s32 %s19, 2
      %s35 = sadd.s32 1, %s28
      %p36 = scmp.ge.s32.totalorder %s35, 1
      %s37 = scalar_select %p36, 0, %s35
      %s38 = sadd.s32 1, %s27
      %s39 = scalar_select %p36, %s38, %s27
      %p40 = scmp.ge.s32.totalorder %s39, 2
      %s41 = scalar_select %p40, 0, %s39
      %s42 = sadd.s32 1, %s26
      %s43 = scalar_select %p40, %s42, %s26
      %p44 = scmp.ge.s32.totalorder %s43, 2
      %s45 = scalar_select %p44, 0, %s43
      %s46 = ssub.s32 %s26, %s45
      %s47 = ssub.s32 %s28, %s37
      %s48 = sor.u32 %s46, %s47
      %p49 = scmp.eq.s32.totalorder %s48, 0
      %s51 = sadd.s32 %s50, 1
      %s52 = scalar_select %p49, %s50, %s51
      %p55 = pneg %p49
      %p56 = scmp.eq.s32.totalorder %s19, 3
      %p57 = por %p55, %p56
      %p58 = scmp.ne.s32.totalorder %s50, %s53
      %p59 = scmp.eq.s32.totalorder %s19, 0
      %p60 = por %p58, %p59
      %p61 = scmp.ne.s32.totalorder %s50, %s53
      %p62 = scmp.eq.s32.totalorder %s24, 3
      %p63 = por %p61, %p62
      %p64 = scmp.ne.s32.totalorder %s53, %s54
      %p65 = scmp.eq.s32.totalorder %s24, 0
      %p66 = por %p64, %p65
      %p67 = scmp.ne.s32.totalorder %s53, %s54
      %p68 = scmp.eq.s32.totalorder %s25, 3
      %p69 = por %p67, %p68
      %p71 = scmp.ne.s32.totalorder %s54, %s70
      %p72 = scmp.eq.s32.totalorder %s25, 0
      %p73 = por %p71, %p72
      %s74 = ssub.s32 %s26, %s45
      %p75 = scmp.eq.s32.totalorder %s74, 0
      %s77 = sadd.s32 %s76, 1
      %s78 = scalar_select %p75, %s76, %s77
      %p81 = pneg %p75
      %p82 = scmp.eq.s32.totalorder %s19, 3
      %p83 = por %p81, %p82
      %p84 = scmp.ne.s32.totalorder %s76, %s79
      %p85 = scmp.eq.s32.totalorder %s19, 0
      %p86 = por %p84, %p85
      %p87 = scmp.ne.s32.totalorder %s76, %s79
      %p88 = scmp.eq.s32.totalorder %s24, 3
      %p89 = por %p87, %p88
      %p90 = scmp.ne.s32.totalorder %s79, %s80
      %p91 = scmp.eq.s32.totalorder %s24, 0
      %p92 = por %p90, %p91
      %p93 = scmp.ne.s32.totalorder %s79, %s80
      %p94 = scmp.eq.s32.totalorder %s25, 3
      %p95 = por %p93, %p94
      %p97 = scmp.ne.s32.totalorder %s80, %s96
      %p98 = scmp.eq.s32.totalorder %s25, 0
      %p99 = por %p97, %p98
      %s100 = ssub.s32 %s27, %s41
      %p101 = scmp.eq.s32.totalorder %s100, 0
      %s103 = sadd.s32 %s102, 1
      %s104 = scalar_select %p101, %s102, %s103
      %p107 = pneg %p101
      %p108 = scmp.eq.s32.totalorder %s19, 3
      %p109 = por %p107, %p108
      %p110 = scmp.ne.s32.totalorder %s102, %s105
      %p111 = scmp.eq.s32.totalorder %s19, 0
      %p112 = por %p110, %p111
      %p113 = scmp.ne.s32.totalorder %s102, %s105
      %p114 = scmp.eq.s32.totalorder %s24, 3
      %p115 = por %p113, %p114
      %p116 = scmp.ne.s32.totalorder %s105, %s106
      %p117 = scmp.eq.s32.totalorder %s24, 0
      %p118 = por %p116, %p117
      %p119 = scmp.ne.s32.totalorder %s105, %s106
      %p120 = scmp.eq.s32.totalorder %s25, 3
      %p121 = por %p119, %p120
      %p123 = scmp.ne.s32.totalorder %s106, %s122
      %p124 = scmp.eq.s32.totalorder %s25, 0
      %p125 = por %p123, %p124
      %s126 = ssub.s32 %s27, %s41
      %p127 = scmp.eq.s32.totalorder %s126, 0
      %s129 = sadd.s32 %s128, 1
      %s130 = scalar_select %p127, %s128, %s129
      %p133 = pneg %p127
      %p134 = scmp.eq.s32.totalorder %s19, 3
      %p135 = por %p133, %p134
      %p136 = scmp.ne.s32.totalorder %s128, %s131
      %p137 = scmp.eq.s32.totalorder %s19, 0
      %p138 = por %p136, %p137
      %p139 = scmp.ne.s32.totalorder %s128, %s131
      %p140 = scmp.eq.s32.totalorder %s24, 3
      %p141 = por %p139, %p140
      %p142 = scmp.ne.s32.totalorder %s131, %s132
      %p143 = scmp.eq.s32.totalorder %s24, 0
      %p144 = por %p142, %p143
      %p145 = scmp.ne.s32.totalorder %s131, %s132
      %p146 = scmp.eq.s32.totalorder %s25, 3
      %p147 = por %p145, %p146
      %p149 = scmp.ne.s32.totalorder %s132, %s148
      %p150 = scmp.eq.s32.totalorder %s25, 0
      %p151 = por %p149, %p150
      %s152 = ssub.s32 %s26, %s45
      %p153 = scmp.eq.s32.totalorder %s152, 0
      %s155 = sadd.s32 %s154, 1
      %s156 = scalar_select %p153, %s154, %s155
      %p159 = pneg %p153
      %p160 = scmp.eq.s32.totalorder %s19, 3
      %p161 = por %p159, %p160
      %p162 = scmp.ne.s32.totalorder %s154, %s157
      %p163 = scmp.eq.s32.totalorder %s19, 0
      %p164 = por %p162, %p163
      %p165 = scmp.ne.s32.totalorder %s154, %s157
      %p166 = scmp.eq.s32.totalorder %s24, 3
      %p167 = por %p165, %p166
      %p168 = scmp.ne.s32.totalorder %s157, %s158
      %p169 = scmp.eq.s32.totalorder %s24, 0
      %p170 = por %p168, %p169
      %p171 = scmp.ne.s32.totalorder %s157, %s158
      %p172 = scmp.eq.s32.totalorder %s25, 3
      %p173 = por %p171, %p172
      %p175 = scmp.ne.s32.totalorder %s158, %s174
      %p176 = scmp.eq.s32.totalorder %s25, 0
      %p177 = por %p175, %p176
      %p178 = scmp.le.s32.totalorder 1, %s19
      %p179 = scmp.lt.s32.totalorder %s19, 5
      %p180 = pnand %p178, %p179
      %p181 = pneg %p180
      // Predicated region
      $region9: #{tpu_custom_call.1} parent=5 // pred_check
        _
      $region10: #{tpu_custom_call.1} parent=5 // pred_check_branch
        %183 = sbr.rel (%p180) target = $region12
      $region11: #{tpu_custom_call.1} parent=5 // pred_region
        %s184 = ssub.s32 %s19, 1
      $region12: #{tpu_custom_call.1} parent=5 // pred_fallthru
        _
      %p185 = scmp.lt.s32.totalorder %s19, 4
      // Predicated region
      $region13: #{tpu_custom_call.1} parent=5 // pred_check
        %p186 = pneg %p185
      $region14: #{tpu_custom_call.1} parent=5 // pred_check_branch
        %188 = sbr.rel (%p186) target = $region16
      $region15: #{tpu_custom_call.1} parent=5 // pred_region
        // Predicated region
        $region17: #{tpu_custom_call.1} parent=15 // pred_check
          %p189 = pneg %p60
        $region18: #{tpu_custom_call.1} parent=15 // pred_check_branch
          %191 = sbr.rel (%p189) target = $region20
        $region19: #{tpu_custom_call.1} parent=15 // pred_region
          %s192 = sand.u32 %s50, 1
          %s193 = scalar_lea.sflag [#allocation4], %s192
          %s194 = sand.u32 %s50, 1
          %s195 = smul.addr %s194, 4
          %s196 = scalar_lea.vmem [#allocation3], %s195
          %s198 = ssub.s32 64, 64
          %199 = vsyncadd %s193, %s198
          %s200 = sadd.s32 %s28, %s26
          %s201 = smul.addr %s200, 64
          %s202 = scalar_lea.hbm %s0, %s201
          %s204 = sshll.u32 %s196, 4
          %s205 = int_to_ptr.vmem [resolvable:$true] %s204
          %207 = dma.hbm_to_vmem [thread:$0]  %s202, 64, %s205, %s193
        $region20: #{tpu_custom_call.1} parent=15 // pred_fallthru
          _
        // Predicated region
        $region21: #{tpu_custom_call.1} parent=15 // pred_check
          %p208 = pneg %p86
        $region22: #{tpu_custom_call.1} parent=15 // pred_check_branch
          %210 = sbr.rel (%p208) target = $region24
        $region23: #{tpu_custom_call.1} parent=15 // pred_region
          %s211 = sand.u32 %s19, 1
          %s212 = scalar_lea.sflag [#allocation7], %s211
          %s213 = sand.u32 %s76, 1
          %s214 = smul.addr %s213, 8
          %s215 = scalar_lea.vmem [#allocation6], %s214
          %s217 = ssub.s32 128, 128
          %218 = vsyncadd %s212, %s217
          %s219 = smul.addr %s26, 128
          %s220 = scalar_lea.hbm %s1, %s219
          %s222 = sshll.u32 %s215, 4
          %s223 = int_to_ptr.vmem [resolvable:$true] %s222
          %225 = dma.hbm_to_vmem [thread:$0]  %s220, 128, %s223, %s212
        $region24: #{tpu_custom_call.1} parent=15 // pred_fallthru
          _
        // Predicated region
        $region25: #{tpu_custom_call.1} parent=15 // pred_check
          %p226 = pneg %p112
        $region26: #{tpu_custom_call.1} parent=15 // pred_check_branch
          %228 = sbr.rel (%p226) target = $region28
        $region27: #{tpu_custom_call.1} parent=15 // pred_region
          %s229 = sand.u32 %s19, 1
          %s230 = scalar_lea.sflag [#allocation7], %s229
          %s231 = sand.u32 %s102, 1
          %s232 = smul.addr %s231, 128
          %s233 = scalar_lea.vmem [#allocation8], %s232
          %s235 = ssub.s32 2048, 2048
          %236 = vsyncadd %s230, %s235
          %s237 = smul.addr %s27, 16
          %s238 = smul.addr %s237, 128
          %s239 = scalar_lea.hbm %s2, %s238
          %s240 = sshll.u32 %s233, 4
          %s241 = int_to_ptr.vmem [resolvable:$true] %s240
          %246 = dma.hbm_to_vmem [thread:$0]  %s239, 2048, %s241, %s230, 128, 128, 8
        $region28: #{tpu_custom_call.1} parent=15 // pred_fallthru
          _
        // Predicated region
        $region29: #{tpu_custom_call.1} parent=15 // pred_check
          %p247 = pneg %p138
        $region30: #{tpu_custom_call.1} parent=15 // pred_check_branch
          %249 = sbr.rel (%p247) target = $region32
        $region31: #{tpu_custom_call.1} parent=15 // pred_region
          %p250 = scmp.lt.s32.totalorder %s27, 1
          %s251 = scalar_select %p250, %s27, 1
          %s252 = scalar_lea.vmem %s3, %s251
        $region32: #{tpu_custom_call.1} parent=15 // pred_fallthru
          _
      $region16: #{tpu_custom_call.1} parent=5 // pred_fallthru
        _
      %p253 = scmp.le.s32.totalorder 1, %s19
      %p254 = scmp.lt.s32.totalorder %s19, 5
      %p255 = pnand %p253, %p254
      %p256 = pneg %p255
      // Predicated region
      $region33: #{tpu_custom_call.1} parent=5 // pred_check
        _
      $region34: #{tpu_custom_call.1} parent=5 // pred_check_branch
        %258 = sbr.rel (%p255) target = $region36
      $region35: #{tpu_custom_call.1} parent=5 // pred_region
        %s259 = ssub.s32 %s19, 1
        %s260 = sand.u32 %s53, 1
        %s261 = scalar_lea.sflag [#allocation4], %s260
        %s262 = sand.u32 %s53, 1
        %s263 = smul.addr %s262, 4
        %s264 = scalar_lea.vmem [#allocation3], %s263
        // Predicated region
        $region37: #{tpu_custom_call.1} parent=35 // pred_check
          %p265 = pneg %p66
        $region38: #{tpu_custom_call.1} parent=35 // pred_check_branch
          %267 = sbr.rel (%p265) target = $region40
        $region39: #{tpu_custom_call.1} parent=35 // pred_region
          %268 = dma.done %s261, 64
        $region40: #{tpu_custom_call.1} parent=35 // pred_fallthru
          _
        %s269 = sand.u32 %s24, 1
        %s270 = scalar_lea.sflag [#allocation7], %s269
        %s271 = sand.u32 %s79, 1
        %s272 = smul.addr %s271, 8
        %s273 = scalar_lea.vmem [#allocation6], %s272
        // Predicated region
        $region41: #{tpu_custom_call.1} parent=35 // pred_check
          %p274 = pneg %p92
        $region42: #{tpu_custom_call.1} parent=35 // pred_check_branch
          %276 = sbr.rel (%p274) target = $region44
        $region43: #{tpu_custom_call.1} parent=35 // pred_region
          %277 = dma.done %s270, 128
        $region44: #{tpu_custom_call.1} parent=35 // pred_fallthru
          _
        %s278 = sand.u32 %s24, 1
        %s279 = scalar_lea.sflag [#allocation7], %s278
        %s280 = sand.u32 %s105, 1
        %s281 = smul.addr %s280, 128
        %s282 = scalar_lea.vmem [#allocation8], %s281
        // Predicated region
        $region45: #{tpu_custom_call.1} parent=35 // pred_check
          %p283 = pneg %p118
        $region46: #{tpu_custom_call.1} parent=35 // pred_check_branch
          %285 = sbr.rel (%p283) target = $region48
        $region47: #{tpu_custom_call.1} parent=35 // pred_region
          %286 = dma.done %s279, 2048
        $region48: #{tpu_custom_call.1} parent=35 // pred_fallthru
          _
        %s287 = sand.u32 %s53, 1
        %s288 = scalar_lea.sflag [#allocation4], %s287
        %s289 = sand.u32 %s53, 1
        %s290 = smul.addr %s289, 4
        %s291 = scalar_lea.vmem [#allocation3], %s290
        %p292 = pneg %p66
        %p293 = pneg %p63
        %s294 = sand.u32 %s24, 1
        %s295 = scalar_lea.sflag [#allocation7], %s294
        %s296 = sand.u32 %s79, 1
        %s297 = smul.addr %s296, 8
        %s298 = scalar_lea.vmem [#allocation6], %s297
        %p299 = pneg %p92
        %p300 = pneg %p89
        %s301 = sand.u32 %s24, 1
        %s302 = scalar_lea.sflag [#allocation7], %s301
        %s303 = sand.u32 %s105, 1
        %s304 = smul.addr %s303, 128
        %s305 = scalar_lea.vmem [#allocation8], %s304
        %p306 = pneg %p118
        %p307 = pneg %p115
        %p308 = scmp.lt.s32.totalorder %s30, 1
        %s309 = scalar_select %p308, %s30, 1
        %s310 = scalar_lea.vmem %s3, %s309
        %p311 = pneg %p144
        %p312 = pneg %p141
        %p313 = pneg %p170
        %p314 = pneg %p167
        %s315 = sand.u32 %s157, 1
        %s316 = scalar_lea.sflag [#allocation5], %s315
        %s317 = sand.u32 %s157, 1
        %s318 = smul.addr %s317, 8
        %s319 = scalar_lea.vmem [#allocation9], %s318
        %p320 = scmp.lt.s32.totalorder %s30, 1
        %s321 = scalar_select %p320, %s30, 1
        %s322 = scalar_lea.vmem %s3, %s321
        %p324 = scmp.eq.s32.totalorder %s31, 0
        // Predicated region
        $region49: #{tpu_custom_call.1} parent=35 // pred_check
          %p325 = pneg %p324
        $region50: #{tpu_custom_call.1} parent=35 // pred_check_branch
          %327 = sbr.rel (%p325) target = $region52
        $region51: #{tpu_custom_call.1} parent=35 // pred_region
          %p328 = scmp.eq.s32.totalorder %s30, 0
          // Predicated region
          $region53: #{tpu_custom_call.1} parent=51 // pred_check
            %p329 = pneg %p328
          $region54: #{tpu_custom_call.1} parent=51 // pred_check_branch
            %331 = sbr.rel (%p329) target = $region56
          $region55: #{tpu_custom_call.1} parent=51 // pred_region
            %v332 = vld [vmem:[%s273] sm:$0xff]
            %v333 = vpack.c.bf16 %v332, %v332
            %v334 = vld [vmem:[%s282] sm:$0xff]
            %v335 = vld [vmem:[%s282 + $0x8] sm:$0xff]
            %v336 = vld [vmem:[%s282 + $0x10] sm:$0xff]
            %v337 = vld [vmem:[%s282 + $0x18] sm:$0xff]
            %v338 = vld [vmem:[%s282 + $0x20] sm:$0xff]
            %v339 = vld [vmem:[%s282 + $0x28] sm:$0xff]
            %v340 = vld [vmem:[%s282 + $0x30] sm:$0xff]
            %v341 = vld [vmem:[%s282 + $0x38] sm:$0xff]
            %v342 = vld [vmem:[%s282 + $0x40] sm:$0xff]
            %v343 = vld [vmem:[%s282 + $0x48] sm:$0xff]
            %v344 = vld [vmem:[%s282 + $0x50] sm:$0xff]
            %v345 = vld [vmem:[%s282 + $0x58] sm:$0xff]
            %v346 = vld [vmem:[%s282 + $0x60] sm:$0xff]
            %v347 = vld [vmem:[%s282 + $0x68] sm:$0xff]
            %v348 = vld [vmem:[%s282 + $0x70] sm:$0xff]
            %v349 = vld [vmem:[%s282 + $0x78] sm:$0xff]
            %v350 = vpack.c.bf16 %v335, %v334
            %v351 = vpack.c.bf16 %v337, %v336
            %v352 = vpack.c.bf16 %v339, %v338
            %v353 = vpack.c.bf16 %v341, %v340
            %v354 = vpack.c.bf16 %v343, %v342
            %v355 = vpack.c.bf16 %v345, %v344
            %v356 = vpack.c.bf16 %v347, %v346
            %v357 = vpack.c.bf16 %v349, %v348
            %358 = vmatprep.subr.bf16.mxu0 0
            %359 = vmatpush1.bf16.msra.mxu0 %v357
            %360 = vmatprep.subr.bf16.mxu0 0
            %361 = vmatpush1.bf16.msra.mxu0 %v356
            %362 = vmatprep.subr.bf16.mxu0 0
            %363 = vmatpush1.bf16.msra.mxu0 %v355
            %364 = vmatprep.subr.bf16.mxu0 0
            %365 = vmatpush1.bf16.msra.mxu0 %v354
            %366 = vmatprep.subr.bf16.mxu0 0
            %367 = vmatpush1.bf16.msra.mxu0 %v353
            %368 = vmatprep.subr.bf16.mxu0 0
            %369 = vmatpush1.bf16.msra.mxu0 %v352
            %370 = vmatprep.subr.bf16.mxu0 0
            %371 = vmatpush1.bf16.msra.mxu0 %v351
            %372 = vmatprep.subr.bf16.mxu0 0
            %373 = vmatpush1.bf16.msra.mxu0 %v350
            %374 = vmatprep.subr.bf16.mxu0 0
            %375 = vmatpush2.bf16.msra.mxu0 0
            %376 = vmatprep.subr.bf16.mxu0 0
            %377 = vmatpush2.bf16.msra.mxu0 0
            %378 = vmatprep.subr.bf16.mxu0 0
            %379 = vmatpush2.bf16.msra.mxu0 0
            %380 = vmatprep.subr.bf16.mxu0 0
            %381 = vmatpush2.bf16.msra.mxu0 0
            %382 = vmatprep.subr.bf16.mxu0 0
            %383 = vmatpush2.bf16.msra.mxu0 0
            %384 = vmatprep.subr.bf16.mxu0 0
            %385 = vmatpush2.bf16.msra.mxu0 0
            %386 = vmatprep.subr.bf16.mxu0 0
            %387 = vmatpush2.bf16.msra.mxu0 0
            %388 = vmatprep.subr.bf16.mxu0 0
            %389 = vmatpush2.bf16.msra.mxu0 0
            %390 = vmatprep.mubr.bf16.mxu0 0
            %391 = vmatmul.mubr.bf16.gmra.mxu0 %v333
            %v392 = vpop.f32.mrf.mxu0
            %v393 = vadd.f32 0.0, %v392
            %v394 = vpop.f32.mrf.mxu0
            %v395 = vpop.f32.mrf.mxu0
            %v396 = vpop.f32.mrf.mxu0
            %397 = vdwg.mxu0
            %v398 = vpack.c.bf16 %v393, %v393
            %399 = vst [vmem:[#allocation2] sm:$0xf] %v398
          $region56: #{tpu_custom_call.1} parent=51 // pred_fallthru
            _
          %p400 = scmp.gt.s32.totalorder %s30, 0
          // Predicated region
          $region57: #{tpu_custom_call.1} parent=51 // pred_check
            %p401 = pneg %p400
          $region58: #{tpu_custom_call.1} parent=51 // pred_check_branch
            %403 = sbr.rel (%p401) target = $region60
          $region59: #{tpu_custom_call.1} parent=51 // pred_region
            %v404 = vld [vmem:[%s319] sm:$0xff]
            %v405 = vpack.c.bf16 %v404, %v404
            %v406 = vld [vmem:[%s282] sm:$0xff]
            %v407 = vld [vmem:[%s282 + $0x8] sm:$0xff]
            %v408 = vld [vmem:[%s282 + $0x10] sm:$0xff]
            %v409 = vld [vmem:[%s282 + $0x18] sm:$0xff]
            %v410 = vld [vmem:[%s282 + $0x20] sm:$0xff]
            %v411 = vld [vmem:[%s282 + $0x28] sm:$0xff]
            %v412 = vld [vmem:[%s282 + $0x30] sm:$0xff]
            %v413 = vld [vmem:[%s282 + $0x38] sm:$0xff]
            %v414 = vld [vmem:[%s282 + $0x40] sm:$0xff]
            %v415 = vld [vmem:[%s282 + $0x48] sm:$0xff]
            %v416 = vld [vmem:[%s282 + $0x50] sm:$0xff]
            %v417 = vld [vmem:[%s282 + $0x58] sm:$0xff]
            %v418 = vld [vmem:[%s282 + $0x60] sm:$0xff]
            %v419 = vld [vmem:[%s282 + $0x68] sm:$0xff]
            %v420 = vld [vmem:[%s282 + $0x70] sm:$0xff]
            %v421 = vld [vmem:[%s282 + $0x78] sm:$0xff]
            %v422 = vpack.c.bf16 %v407, %v406
            %v423 = vpack.c.bf16 %v409, %v408
            %v424 = vpack.c.bf16 %v411, %v410
            %v425 = vpack.c.bf16 %v413, %v412
            %v426 = vpack.c.bf16 %v415, %v414
            %v427 = vpack.c.bf16 %v417, %v416
            %v428 = vpack.c.bf16 %v419, %v418
            %v429 = vpack.c.bf16 %v421, %v420
            %430 = vmatprep.subr.bf16.mxu0 0
            %431 = vmatpush1.bf16.msra.mxu0 %v429
            %432 = vmatprep.subr.bf16.mxu0 0
            %433 = vmatpush1.bf16.msra.mxu0 %v428
            %434 = vmatprep.subr.bf16.mxu0 0
            %435 = vmatpush1.bf16.msra.mxu0 %v427
            %436 = vmatprep.subr.bf16.mxu0 0
            %437 = vmatpush1.bf16.msra.mxu0 %v426
            %438 = vmatprep.subr.bf16.mxu0 0
            %439 = vmatpush1.bf16.msra.mxu0 %v425
            %440 = vmatprep.subr.bf16.mxu0 0
            %441 = vmatpush1.bf16.msra.mxu0 %v424
            %442 = vmatprep.subr.bf16.mxu0 0
            %443 = vmatpush1.bf16.msra.mxu0 %v423
            %444 = vmatprep.subr.bf16.mxu0 0
            %445 = vmatpush1.bf16.msra.mxu0 %v422
            %446 = vmatprep.subr.bf16.mxu0 0
            %447 = vmatpush2.bf16.msra.mxu0 0
            %448 = vmatprep.subr.bf16.mxu0 0
            %449 = vmatpush2.bf16.msra.mxu0 0
            %450 = vmatprep.subr.bf16.mxu0 0
            %451 = vmatpush2.bf16.msra.mxu0 0
            %452 = vmatprep.subr.bf16.mxu0 0
            %453 = vmatpush2.bf16.msra.mxu0 0
            %454 = vmatprep.subr.bf16.mxu0 0
            %455 = vmatpush2.bf16.msra.mxu0 0
            %456 = vmatprep.subr.bf16.mxu0 0
            %457 = vmatpush2.bf16.msra.mxu0 0
            %458 = vmatprep.subr.bf16.mxu0 0
            %459 = vmatpush2.bf16.msra.mxu0 0
            %460 = vmatprep.subr.bf16.mxu0 0
            %461 = vmatpush2.bf16.msra.mxu0 0
            %462 = vmatprep.mubr.bf16.mxu0 0
            %463 = vmatmul.mubr.bf16.gmra.mxu0 %v405
            %v464 = vpop.f32.mrf.mxu0
            %v465 = vadd.f32 0.0, %v464
            %v466 = vpop.f32.mrf.mxu0
            %v467 = vpop.f32.mrf.mxu0
            %v468 = vpop.f32.mrf.mxu0
            %469 = vdwg.mxu0
            %v470 = vpack.c.bf16 %v465, %v465
            %471 = vst [vmem:[#allocation2] sm:$0xf] %v470
          $region60: #{tpu_custom_call.1} parent=51 // pred_fallthru
            _
        $region52: #{tpu_custom_call.1} parent=35 // pred_fallthru
          _
        %v472 = vld [vmem:[%s264] sm:$0xf]
        %v473 = vld [vmem:[#allocation2] sm:$0xf]
        %v474 = vld [vmem:[%s322] sm:$0x1]
        %v476 = vlaneseq
        %v477 = vshrl.u32 %v476, 7
        %v478 = vsub.s32 0, %v477
        %v479 = vrot.slane %v474, %v478
        %vm481 = vcmask 64512
        %v483 = vsel %vm481, %v472, 0
        %vm485 = vcmask 1043456
        %v487 = vsel %vm485, %v473, 0
        %489 = vmatprep.subr.bf16.mxu0 0
        %490 = vmatpush1.bf16.msra.mxu0 0
        %491 = vmatprep.subr.bf16.mxu0 0
        %492 = vmatpush1.bf16.msra.mxu0 0
        %493 = vmatprep.subr.bf16.mxu0 0
        %494 = vmatpush1.bf16.msra.mxu0 0
        %495 = vmatprep.subr.bf16.mxu0 0
        %496 = vmatpush1.bf16.msra.mxu0 0
        %497 = vmatprep.subr.bf16.mxu0 0
        %498 = vmatpush1.bf16.msra.mxu0 0
        %499 = vmatprep.subr.bf16.mxu0 0
        %500 = vmatpush1.bf16.msra.mxu0 0
        %501 = vmatprep.subr.bf16.mxu0 0
        %502 = vmatpush1.bf16.msra.mxu0 0
        %503 = vmatprep.subr.bf16.mxu0 0
        %504 = vmatpush1.bf16.msra.mxu0 %v487
        %505 = vmatprep.subr.bf16.mxu0 0
        %506 = vmatpush2.bf16.msra.mxu0 0
        %507 = vmatprep.subr.bf16.mxu0 0
        %508 = vmatpush2.bf16.msra.mxu0 0
        %509 = vmatprep.subr.bf16.mxu0 0
        %510 = vmatpush2.bf16.msra.mxu0 0
        %511 = vmatprep.subr.bf16.mxu0 0
        %512 = vmatpush2.bf16.msra.mxu0 0
        %513 = vmatprep.subr.bf16.mxu0 0
        %514 = vmatpush2.bf16.msra.mxu0 0
        %515 = vmatprep.subr.bf16.mxu0 0
        %516 = vmatpush2.bf16.msra.mxu0 0
        %517 = vmatprep.subr.bf16.mxu0 0
        %518 = vmatpush2.bf16.msra.mxu0 0
        %519 = vmatprep.subr.bf16.mxu0 0
        %520 = vmatpush2.bf16.msra.mxu0 0
        %521 = vmatprep.mubr.bf16.mxu0 0
        %522 = vmatmul.mubr.bf16.gmra.mxu0 %v483
        %v523 = vpop.f32.mrf.mxu0
        %v524 = vadd.f32 %v479, %v523
        %v525 = vpop.f32.mrf.mxu0
        %v526 = vpop.f32.mrf.mxu0
        %v527 = vpop.f32.mrf.mxu0
        %528 = vdwg.mxu0
        %p529 = scmp.eq.s32.totalorder %s30, 1
        %v530 = vmax.f32 %v524, 0.0
        %s531 = scalar_select %p529, 1, 0
        %v532 = vstv %s531
        %vm533 = vcmp.eq.s32.totalorder %v532, 1
        %v534 = vsel %vm533, %v524, %v530
        %s535 = smul.u32 %s31, 8
        %s536 = scalar_lea.vmem %s319, %s535 [#allocation9]
        %537 = vst [vmem:[%s536] sm:$0xff] %v534
        %s538 = sand.u32 %s157, 1
        %s539 = scalar_lea.sflag [#allocation5], %s538
        %s540 = sand.u32 %s157, 1
        %s541 = smul.addr %s540, 8
        %s542 = scalar_lea.vmem [#allocation9], %s541
        // Predicated region
        $region61: #{tpu_custom_call.1} parent=35 // pred_check
          %p543 = pneg %p167
        $region62: #{tpu_custom_call.1} parent=35 // pred_check_branch
          %545 = sbr.rel (%p543) target = $region64
        $region63: #{tpu_custom_call.1} parent=35 // pred_region
          %s547 = ssub.s32 128, 128
          %548 = vsyncadd %s539, %s547
          %s549 = smul.addr %s29, 128
          %s550 = scalar_lea.hbm %s4, %s549
          %s552 = sshll.u32 %s542, 4
          %s553 = int_to_ptr.vmem [resolvable:$true] %s552
          %555 = dma.vmem_to_hbm [thread:$0]  %s553, 128, %s550, %s539
        $region64: #{tpu_custom_call.1} parent=35 // pred_fallthru
          _
      $region36: #{tpu_custom_call.1} parent=5 // pred_fallthru
        _
      %p556 = scmp.le.s32.totalorder 2, %s19
      // Predicated region
      $region65: #{tpu_custom_call.1} parent=5 // pred_check
        %p557 = pneg %p556
      $region66: #{tpu_custom_call.1} parent=5 // pred_check_branch
        %559 = sbr.rel (%p557) target = $region68
      $region67: #{tpu_custom_call.1} parent=5 // pred_region
        %s560 = ssub.s32 %s19, 2
        // Predicated region
        $region69: #{tpu_custom_call.1} parent=67 // pred_check
          %p561 = pneg %p173
        $region70: #{tpu_custom_call.1} parent=67 // pred_check_branch
          %563 = sbr.rel (%p561) target = $region72
        $region71: #{tpu_custom_call.1} parent=67 // pred_region
          %s564 = sand.u32 %s158, 1
          %s565 = scalar_lea.sflag [#allocation5], %s564
          %s566 = sand.u32 %s158, 1
          %s567 = smul.addr %s566, 8
          %s568 = scalar_lea.vmem [#allocation9], %s567
          %569 = dma.done %s565, 128
        $region72: #{tpu_custom_call.1} parent=67 // pred_fallthru
          _
      $region68: #{tpu_custom_call.1} parent=5 // pred_fallthru
        _
    $region6: #{tpu_custom_call.1} parent=1 // loop_footer
      %s23 = sadd.s32 1, %s19
    $region7: #{tpu_custom_call.1} parent=1 // loop_footer_branch
      %18 = sbr.rel target = $region3
    $region8: #{tpu_custom_call.1} parent=1 // loop_exit
      _
    %570 = vsyncpa [#allocation4], 1
    %s571 = scalar_lea.sflag [#allocation4], 1
    %572 = vsyncpa %s571, 1
    %573 = vsyncpa [#allocation7], 1
    %s574 = scalar_lea.sflag [#allocation7], 1
    %575 = vsyncpa %s574, 1
    %576 = vsyncpa [#allocation5], 1
    %s577 = scalar_lea.sflag [#allocation5], 1
    %578 = vsyncpa %s577, 1

</llo_original>
